<compile_context>
chip_gen: v5e
topology: v5e:2x2
jax: 0.10.0
libtpu: 0.0.40
codegen_flags: <defaults>
</compile_context>

<pallas_src>
import jax
import jax.numpy as jnp
from jax.experimental import pallas as pl
from jax.experimental.pallas import tpu as pltpu


_LANE = 128
_VMEM_BUDGET = 28 * 1024 * 1024   # pipeline-buffer budget (safe on v5e/v6e/v7x)
_VMEM_LIMIT = 48 * 1024 * 1024    # scoped-VMEM request (< 64 MiB v7x physical)


def _round_up(x, m):
    return ((x + m - 1) // m) * m


def _sublane(dtype):
    # Second-to-last-dim packing: 8 rows for 32-bit, 16 for bf16, 32 for int8/fp8.
    return max(8, 32 // jnp.dtype(dtype).itemsize)


def _pick_tile(dim, cap, align):
    """Choose a tile edge for `dim`, capped at `cap`.

    Returns (tile, padded_dim). Preference order:
      (a) the full dim if it fits under the cap (no alignment constraint,
          no padding, no output slice),
      (b) a large `align`-multiple that divides `dim` exactly (no padding),
      (c) pad `dim` up to a multiple of the aligned cap.
    """
    if dim <= cap:
        return dim, dim
    cap = max(align, (cap // align) * align)
    t = cap
    while t >= max(align, cap // 2):
        if dim % t == 0:
            return t, dim
        t -= align
    return cap, _round_up(dim, cap)


# --------------------------------------------------------------------------
# Kernel bodies (batch dim squeezed out; tiles are native 2-D MXU operands).
# --------------------------------------------------------------------------

def _bmm_kernel_single(a_ref, b_ref, o_ref):
    # Collapsed-K path: one MXU pass per output tile, no accumulator needed.
    o_ref[...] = jnp.dot(
        a_ref[...], b_ref[...], preferred_element_type=jnp.float32
    ).astype(o_ref.dtype)


def _bmm_kernel_acc_inplace(a_ref, b_ref, o_ref):
    # Tiled-K, f32 output: accumulate directly into the resident output tile.
    @pl.when(pl.program_id(3) == 0)
    def _init():
        o_ref[...] = jnp.zeros_like(o_ref)

    o_ref[...] += jnp.dot(
        a_ref[...], b_ref[...], preferred_element_type=jnp.float32
    )


def _bmm_kernel_acc_scratch(a_ref, b_ref, o_ref, acc_ref):
    # Tiled-K, non-f32 output: f32 VMEM accumulator + final cast.
    kk = pl.program_id(3)

    @pl.when(kk == 0)
    def _init():
        acc_ref[...] = jnp.zeros_like(acc_ref)

    acc_ref[...] += jnp.dot(
        a_ref[...], b_ref[...], preferred_element_type=jnp.float32
    )

    @pl.when(kk == pl.num_programs(3) - 1)
    def _store():
        o_ref[...] = acc_ref[...].astype(o_ref.dtype)


# --------------------------------------------------------------------------
# Wrapper
# --------------------------------------------------------------------------

def bmm(A, B, *, tm_pref=512, tn_pref=512, vmem_budget=None):
    """Batched matmul via a tiled Pallas TPU kernel.

    A: (b, m, k), B: (b, k, n) -> (b, m, n).
    """
    assert A.ndim == 3 and B.ndim == 3
    bA, m, k = A.shape
    bB, kB, n = B.shape
    assert bA == bB and k == kB, "incompatible bmm shapes"

    budget = _VMEM_BUDGET if vmem_budget is None else int(vmem_budget)

    out_dtype = jnp.result_type(A.dtype, B.dtype)
    a_bytes = jnp.dtype(A.dtype).itemsize
    b_bytes = jnp.dtype(B.dtype).itemsize
    o_bytes = jnp.dtype(out_dtype).itemsize

    # ---- M / N tiles (full dim if it fits, else a big 128-aligned tile). ----
    tm, Mp = _pick_tile(m, tm_pref, _LANE)
    tn, Np = _pick_tile(n, tn_pref, _LANE)

    # ---- Megacore / 2-TC: ensure >= 2 independent output tiles. ------------
    n_parallel = bA * (Mp // tm) * (Np // tn)
    if n_parallel < 2:
        if tn % (2 * _LANE) == 0:
            tn //= 2
        elif tm % (2 * _sublane(A.dtype)) == 0:
            tm //= 2

    # ---- K: collapse if the full panel fits the VMEM budget. ---------------
    out_buf = 2 * tm * tn * o_bytes
    collapse_cost = 2 * tm * k * a_bytes + 2 * k * tn * b_bytes + out_buf
    if collapse_cost <= budget:
        tk, Kp = k, k
    else:
        acc_buf = 0 if out_dtype == jnp.float32 else tm * tn * 4
        per_k = 2 * (tm * a_bytes + tn * b_bytes)
        tk_cap = max(_LANE, ((budget - out_buf - acc_buf) // per_k) // _LANE * _LANE)
        tk, Kp = _pick_tile(k, tk_cap, _LANE)

    # ---- Pad only the dims that need it (K zero-pad is required for the
    #      accumulation; M/N pads only when no clean tile exists). -----------
    pad_m, pad_n, pad_k = Mp - m, Np - n, Kp - k
    if pad_m or pad_k:
        A = jnp.pad(A, ((0, 0), (0, pad_m), (0, pad_k)))
    if pad_k or pad_n:
        B = jnp.pad(B, ((0, 0), (0, pad_k), (0, pad_n)))

    collapsed = tk == Kp  # single K block per output tile

    if collapsed:
        grid = (bA, Mp // tm, Np // tn)
        in_specs = [
            pl.BlockSpec((pl.Squeezed(), tm, Kp), lambda b, i, j: (b, i, 0)),
            pl.BlockSpec((pl.Squeezed(), Kp, tn), lambda b, i, j: (b, 0, j)),
        ]
        out_spec = pl.BlockSpec((pl.Squeezed(), tm, tn), lambda b, i, j: (b, i, j))
        kernel = _bmm_kernel_single
        scratch = ()
        dims = ("parallel", "parallel", "parallel")
        # A row-panel is DMA'd once (block index constant over the j sweep);
        # B is re-read once per M row-panel.
        a_reads, b_reads = 1, Mp // tm
    else:
        grid = (bA, Mp // tm, Np // tn, Kp // tk)
        in_specs = [
            pl.BlockSpec((pl.Squeezed(), tm, tk), lambda b, i, j, kk: (b, i, kk)),
            pl.BlockSpec((pl.Squeezed(), tk, tn), lambda b, i, j, kk: (b, kk, j)),
        ]
        out_spec = pl.BlockSpec(
            (pl.Squeezed(), tm, tn), lambda b, i, j, kk: (b, i, j)
        )
        if out_dtype == jnp.float32:
            kernel = _bmm_kernel_acc_inplace
            scratch = ()
        else:
            kernel = _bmm_kernel_acc_scratch
            scratch = (pltpu.VMEM((tm, tn), jnp.float32),)
        dims = ("parallel", "parallel", "parallel", "arbitrary")
        a_reads, b_reads = Np // tn, Mp // tm

    cost = pl.CostEstimate(
        flops=2 * bA * Mp * Kp * Np,
        transcendentals=0,
        bytes_accessed=(
            a_bytes * bA * Mp * Kp * a_reads
            + b_bytes * bA * Kp * Np * b_reads
            + o_bytes * bA * Mp * Np
        ),
    )

    out = pl.pallas_call(
        kernel,
        out_shape=jax.ShapeDtypeStruct((bA, Mp, Np), out_dtype),
        grid_spec=pltpu.PrefetchScalarGridSpec(
            num_scalar_prefetch=0,
            grid=grid,
            in_specs=in_specs,
            out_specs=out_spec,
            scratch_shapes=scratch,
        ),
        compiler_params=pltpu.CompilerParams(
            dimension_semantics=dims,
            vmem_limit_bytes=_VMEM_LIMIT,
        ),
        cost_estimate=cost,
    )(A, B)

    if pad_m or pad_n:
        out = out[:, :m, :n]
    return out


class BMM:
    """JAX/Pallas analogue of the PyTorch BMM module (no parameters)."""

    def __init__(self):
        self.A_m = 0
        self.A_n = 0
        self.B_p = 0
        self.training = False

    def __call__(self, A, B):
        if not self.training:
            if self.A_m == 0:
                _, self.A_m, self.A_n = A.shape
                _, _, self.B_p = B.shape
        return bmm(A, B)

    def flops(self):
        return 2 * self.A_m * self.A_n * self.B_p


if __name__ == "__main__":
    key = jax.random.PRNGKey(0)
    k1, k2 = jax.random.split(key)
    hi = jax.lax.Precision.HIGHEST

    # --- Small case (module-scale shapes): collapsed-K path. ---------------
    batch, m, k, n = 2, 8, 32, 16
    A = jax.random.normal(k1, (batch, m, k), dtype=jnp.float32)
    B = jax.random.normal(k2, (batch, k, n), dtype=jnp.float32)

    mod = BMM()
    out = jax.block_until_ready(mod(A, B))
    ref = jnp.einsum("bmk,bkn->bmn", A, B, precision=hi)
    assert out.shape == (batch, m, n)
    assert jnp.allclose(out, ref, atol=1e-4, rtol=1e-4)

    # --- Unaligned shapes: full-dim tiles, no padding, no output slice. ----
    k3, k4 = jax.random.split(k2)
    A2 = jax.random.normal(k3, (3, 200, 384), dtype=jnp.float32)
    B2 = jax.random.normal(k4, (3, 384, 300), dtype=jnp.float32)
    out2 = jax.block_until_ready(bmm(A2, B2))
    ref2 = jnp.einsum("bmk,bkn->bmn", A2, B2, precision=hi)
    assert out2.shape == (3, 200, 300)
    assert jnp.allclose(out2, ref2, atol=1e-3, rtol=1e-3)

    # --- Force the tiled-K (reduction-axis) path via a tiny VMEM budget. ---
    k5, k6 = jax.random.split(k4)
    A3 = jax.random.normal(k5, (2, 64, 512), dtype=jnp.float32)
    B3 = jax.random.normal(k6, (2, 512, 128), dtype=jnp.float32)
    out3 = jax.block_until_ready(bmm(A3, B3, vmem_budget=1 << 16))
    ref3 = jnp.einsum("bmk,bkn->bmn", A3, B3, precision=hi)
    assert jnp.allclose(out3, ref3, atol=1e-2, rtol=1e-3)

    # --- bf16 inputs exercise the scratch-accumulator tiled path. ----------
    A4 = A3.astype(jnp.bfloat16)
    B4 = B3.astype(jnp.bfloat16)
    out4 = jax.block_until_ready(bmm(A4, B4, vmem_budget=1 << 16))
    ref4 = jnp.einsum(
        "bmk,bkn->bmn", A4.astype(jnp.float32), B4.astype(jnp.float32), precision=hi
    )
    assert out4.dtype == jnp.bfloat16
    assert jnp.allclose(out4.astype(jnp.float32), ref4, atol=0.5, rtol=5e-2)

    print("KERNEL_OK")
</pallas_src>

<mosaic_0001>
module attributes {stable_mosaic.version = 11 : i64} {
  func.func @_bmm_kernel_single(%arg0: i32, %arg1: i32, %arg2: i32, %arg3: memref<1x8x32xf32, #tpu.memory_space<vmem>>, %arg4: memref<1x32x16xf32, #tpu.memory_space<vmem>>, %arg5: memref<1x8x16xf32, #tpu.memory_space<vmem>>) attributes {dimension_semantics = [#tpu.dimension_semantics<parallel>, #tpu.dimension_semantics<parallel>, #tpu.dimension_semantics<parallel>], iteration_bounds = array<i64: 2, 1, 1>, scalar_prefetch = 0 : i64, scratch_operands = 0 : i64, tpu.core_type = #tpu.core_type<tc>, window_params = [{transform_indices = @transform_0, window_bounds = array<i64: 1, 8, 32>}, {transform_indices = @transform_1, window_bounds = array<i64: 1, 32, 16>}, {transform_indices = @transform_2, window_bounds = array<i64: 1, 8, 16>}]} {
    %c0 = arith.constant 0 : index
    %c0_0 = arith.constant 0 : index
    %c0_1 = arith.constant 0 : index
    %0 = vector.load %arg3[%c0, %c0_0, %c0_1] : memref<1x8x32xf32, #tpu.memory_space<vmem>>, vector<1x8x32xf32>
    %1 = vector.shape_cast %0 : vector<1x8x32xf32> to vector<8x32xf32>
    %c0_2 = arith.constant 0 : index
    %c0_3 = arith.constant 0 : index
    %c0_4 = arith.constant 0 : index
    %2 = vector.load %arg4[%c0_2, %c0_3, %c0_4] : memref<1x32x16xf32, #tpu.memory_space<vmem>>, vector<1x32x16xf32>
    %3 = vector.shape_cast %2 : vector<1x32x16xf32> to vector<32x16xf32>
    %cst = arith.constant dense<0.000000e+00> : vector<8x16xf32>
    %4 = tpu.matmul %1, %3, %cst {dimension_numbers = #tpu.dot_dimension_numbers<[1], [0], [0], [1], [0, 0, 1, 1], [], []>} : vector<8x32xf32>, vector<32x16xf32>, vector<8x16xf32> -> vector<8x16xf32>
    %c0_5 = arith.constant 0 : index
    %c0_6 = arith.constant 0 : index
    %c0_7 = arith.constant 0 : index
    %5 = vector.load %arg5[%c0_5, %c0_6, %c0_7] : memref<1x8x16xf32, #tpu.memory_space<vmem>>, vector<1x8x16xf32>
    %6 = vector.shape_cast %5 : vector<1x8x16xf32> to vector<8x16xf32>
    %7 = vector.shape_cast %4 : vector<8x16xf32> to vector<1x8x16xf32>
    tpu.vector_store %arg5[%c0_5, %c0_6, %c0_7], %7 {strides = array<i32>} : memref<1x8x16xf32, #tpu.memory_space<vmem>>, vector<1x8x16xf32>,
    return
  }
  func.func @transform_0(%arg0: i32, %arg1: i32, %arg2: i32) -> (i32, i32, i32) {
    %c0_i32 = arith.constant 0 : i32
    %c0_i32_0 = arith.constant 0 : i32
    return %arg0, %arg1, %c0_i32 : i32, i32, i32
  }
  func.func @transform_1(%arg0: i32, %arg1: i32, %arg2: i32) -> (i32, i32, i32) {
    %c0_i32 = arith.constant 0 : i32
    %c0_i32_0 = arith.constant 0 : i32
    return %arg0, %c0_i32, %arg2 : i32, i32, i32
  }
  func.func @transform_2(%arg0: i32, %arg1: i32, %arg2: i32) -> (i32, i32, i32) {
    %c0_i32 = arith.constant 0 : i32
    return %arg0, %arg1, %arg2 : i32, i32, i32
  }
}

</mosaic_0001>

<llo_original>
// kernel: tpu_custom_call.1
$region0: #{tpu_custom_call.1}
  #allocation0 [shape = 'u32[]', space=smem, size = 0x4, offset = 0x4, fixed_abs, tag = 'smem constant byte address 0x4 - core index']
  #allocation1 [shape = 'u32[72,128]{1,0:T(1,128)}', space=vmem, size = 0x9000, scoped, tag = 'internal scratch']
  %s0 = inlined_call_operand.vmem [shape: f32[2,8,32], index: 0, kind: input, shape index: {}]
  %s1 = inlined_call_operand.vmem [shape: f32[2,32,16], index: 1, kind: input, shape index: {}]
  %s2 = inlined_call_operand.hbm [shape: f32[2,8,16], index: 2, kind: output, shape index: {}]
  %s3 = sld [smem:[#allocation0]]
  $region41: #{tpu_custom_call.1} parent=0
    _
  %s5 = ssub.s32 1, %s3
  %s6 = scalar_select 0, %s5, %s3
  $region1: #{tpu_custom_call.1} parent=0
    #allocation2 [shape = 'u8[8192]{0}', space=vmem, size = 0x2000, scoped, tag = 'output window, operand 0']
    #allocation3 [shape = 's32[2]{0}', space=sflag, size = 0x8, scoped, tag = 'scoped memory for tpu_custom_call.1']
    %7 = vsyncpa [#allocation3], 0
    %s8 = scalar_lea.sflag [#allocation3], 1
    %9 = vsyncpa %s8, 0
    loop: start=0, step=1, limit=4
    $region2: #{tpu_custom_call.1} parent=1 // loop_pre_header
      _
    $region3: #{tpu_custom_call.1} parent=1 // loop_header
      %s11 = sphi 0, %s15
      %p12 = scmp.ge.s32.totalorder %s11, 4
      %s18 = sphi 0, %s37
      %s19 = sphi 0, %s33
      %s20 = sphi 0, %s29
      %s21 = sphi 0, %s18
      %s22 = sphi 0, %s19
      %s23 = sphi 0, %s20
      %s24 = sphi 0, %s21
      %s25 = sphi 0, %s22
      %s26 = sphi 0, %s23
      %s42 = sphi 0, %s44
      %s45 = sphi 0, %s42
      %s46 = sphi 0, %s45
      %s62 = sphi 0, %s46
      %s70 = sphi 0, %s72
      %s73 = sphi 0, %s70
      %s74 = sphi 0, %s73
      %s90 = sphi 0, %s74
      %s100 = sphi 0, %s102
      %s103 = sphi 0, %s100
      %s104 = sphi 0, %s103
      %s120 = sphi 0, %s104
    $region4: #{tpu_custom_call.1} parent=1 // loop_header_branch
      %14 = sbr.rel (%p12) target = $region8
    $region5: #{tpu_custom_call.1} parent=1 // loop_body
      %s16 = ssub.s32 %s11, 1
      %s17 = ssub.s32 %s11, 2
      %s27 = sadd.s32 1, %s20
      %p28 = scmp.ge.s32.totalorder %s27, 1
      %s29 = scalar_select %p28, 0, %s27
      %s30 = sadd.s32 1, %s19
      %s31 = scalar_select %p28, %s30, %s19
      %p32 = scmp.ge.s32.totalorder %s31, 1
      %s33 = scalar_select %p32, 0, %s31
      %s34 = sadd.s32 1, %s18
      %s35 = scalar_select %p32, %s34, %s18
      %p36 = scmp.ge.s32.totalorder %s35, 2
      %s37 = scalar_select %p36, 0, %s35
      %s38 = ssub.s32 %s18, %s37
      %s39 = ssub.s32 %s19, %s33
      %s40 = sor.u32 %s38, %s39
      %p41 = scmp.eq.s32.totalorder %s40, 0
      %s43 = sadd.s32 %s42, 1
      %s44 = scalar_select %p41, %s42, %s43
      %p47 = pneg %p41
      %p48 = scmp.eq.s32.totalorder %s11, 1
      %p49 = por %p47, %p48
      %p50 = scmp.ne.s32.totalorder %s42, %s45
      %p51 = scmp.eq.s32.totalorder %s11, 0
      %p52 = por %p50, %p51
      %p53 = scmp.ne.s32.totalorder %s42, %s45
      %p54 = scmp.eq.s32.totalorder %s16, 1
      %p55 = por %p53, %p54
      %p56 = scmp.ne.s32.totalorder %s45, %s46
      %p57 = scmp.eq.s32.totalorder %s16, 0
      %p58 = por %p56, %p57
      %p59 = scmp.ne.s32.totalorder %s45, %s46
      %p60 = scmp.eq.s32.totalorder %s17, 1
      %p61 = por %p59, %p60
      %p63 = scmp.ne.s32.totalorder %s46, %s62
      %p64 = scmp.eq.s32.totalorder %s17, 0
      %p65 = por %p63, %p64
      %s66 = ssub.s32 %s18, %s37
      %s67 = ssub.s32 %s20, %s29
      %s68 = sor.u32 %s66, %s67
      %p69 = scmp.eq.s32.totalorder %s68, 0
      %s71 = sadd.s32 %s70, 1
      %s72 = scalar_select %p69, %s70, %s71
      %p75 = pneg %p69
      %p76 = scmp.eq.s32.totalorder %s11, 1
      %p77 = por %p75, %p76
      %p78 = scmp.ne.s32.totalorder %s70, %s73
      %p79 = scmp.eq.s32.totalorder %s11, 0
      %p80 = por %p78, %p79
      %p81 = scmp.ne.s32.totalorder %s70, %s73
      %p82 = scmp.eq.s32.totalorder %s16, 1
      %p83 = por %p81, %p82
      %p84 = scmp.ne.s32.totalorder %s73, %s74
      %p85 = scmp.eq.s32.totalorder %s16, 0
      %p86 = por %p84, %p85
      %p87 = scmp.ne.s32.totalorder %s73, %s74
      %p88 = scmp.eq.s32.totalorder %s17, 1
      %p89 = por %p87, %p88
      %p91 = scmp.ne.s32.totalorder %s74, %s90
      %p92 = scmp.eq.s32.totalorder %s17, 0
      %p93 = por %p91, %p92
      %s94 = ssub.s32 %s18, %s37
      %s95 = ssub.s32 %s19, %s33
      %s96 = sor.u32 %s94, %s95
      %s97 = ssub.s32 %s20, %s29
      %s98 = sor.u32 %s96, %s97
      %p99 = scmp.eq.s32.totalorder %s98, 0
      %s101 = sadd.s32 %s100, 1
      %s102 = scalar_select %p99, %s100, %s101
      %p105 = pneg %p99
      %p106 = scmp.eq.s32.totalorder %s11, 1
      %p107 = por %p105, %p106
      %p108 = scmp.ne.s32.totalorder %s100, %s103
      %p109 = scmp.eq.s32.totalorder %s11, 0
      %p110 = por %p108, %p109
      %p111 = scmp.ne.s32.totalorder %s100, %s103
      %p112 = scmp.eq.s32.totalorder %s16, 1
      %p113 = por %p111, %p112
      %p114 = scmp.ne.s32.totalorder %s103, %s104
      %p115 = scmp.eq.s32.totalorder %s16, 0
      %p116 = por %p114, %p115
      %p117 = scmp.ne.s32.totalorder %s103, %s104
      %p118 = scmp.eq.s32.totalorder %s17, 1
      %p119 = por %p117, %p118
      %p121 = scmp.ne.s32.totalorder %s104, %s120
      %p122 = scmp.eq.s32.totalorder %s17, 0
      %p123 = por %p121, %p122
      %p124 = scmp.le.s32.totalorder 1, %s11
      %p125 = scmp.lt.s32.totalorder %s11, 3
      %p126 = pnand %p124, %p125
      %p127 = pneg %p126
      // Predicated region
      $region9: #{tpu_custom_call.1} parent=5 // pred_check
        _
      $region10: #{tpu_custom_call.1} parent=5 // pred_check_branch
        %129 = sbr.rel (%p126) target = $region12
      $region11: #{tpu_custom_call.1} parent=5 // pred_region
        %s130 = ssub.s32 %s11, 1
      $region12: #{tpu_custom_call.1} parent=5 // pred_fallthru
        _
      %p131 = scmp.lt.s32.totalorder %s11, 2
      // Predicated region
      $region13: #{tpu_custom_call.1} parent=5 // pred_check
        %p132 = pneg %p131
      $region14: #{tpu_custom_call.1} parent=5 // pred_check_branch
        %134 = sbr.rel (%p132) target = $region16
      $region15: #{tpu_custom_call.1} parent=5 // pred_region
        // Predicated region
        $region17: #{tpu_custom_call.1} parent=15 // pred_check
          %p135 = pneg %p52
        $region18: #{tpu_custom_call.1} parent=15 // pred_check_branch
          %137 = sbr.rel (%p135) target = $region20
        $region19: #{tpu_custom_call.1} parent=15 // pred_region
          %p138 = scmp.lt.s32.totalorder %s18, 1
          %s139 = scalar_select %p138, %s18, 1
          %p140 = scmp.lt.s32.totalorder %s19, 0
          %s141 = scalar_select %p140, %s19, 0
          %s142 = sadd.s32 %s141, %s139
          %s143 = smul.addr %s142, 8
          %s144 = scalar_lea.vmem %s0, %s143
        $region20: #{tpu_custom_call.1} parent=15 // pred_fallthru
          _
        // Predicated region
        $region21: #{tpu_custom_call.1} parent=15 // pred_check
          %p145 = pneg %p80
        $region22: #{tpu_custom_call.1} parent=15 // pred_check_branch
          %147 = sbr.rel (%p145) target = $region24
        $region23: #{tpu_custom_call.1} parent=15 // pred_region
          %p148 = scmp.lt.s32.totalorder %s18, 1
          %s149 = scalar_select %p148, %s18, 1
          %p150 = scmp.lt.s32.totalorder %s20, 0
          %s151 = scalar_select %p150, %s20, 0
          %s152 = smul.addr %s149, 4
          %s153 = sadd.s32 %s151, %s152
          %s154 = smul.addr %s153, 8
          %s155 = scalar_lea.vmem %s1, %s154
        $region24: #{tpu_custom_call.1} parent=15 // pred_fallthru
          _
      $region16: #{tpu_custom_call.1} parent=5 // pred_fallthru
        _
      %p156 = scmp.le.s32.totalorder 1, %s11
      %p157 = scmp.lt.s32.totalorder %s11, 3
      %p158 = pnand %p156, %p157
      %p159 = pneg %p158
      // Predicated region
      $region25: #{tpu_custom_call.1} parent=5 // pred_check
        _
      $region26: #{tpu_custom_call.1} parent=5 // pred_check_branch
        %161 = sbr.rel (%p158) target = $region28
      $region27: #{tpu_custom_call.1} parent=5 // pred_region
        %s162 = ssub.s32 %s11, 1
        %p163 = scmp.lt.s32.totalorder %s21, 1
        %s164 = scalar_select %p163, %s21, 1
        %p165 = scmp.lt.s32.totalorder %s22, 0
        %s166 = scalar_select %p165, %s22, 0
        %s167 = sadd.s32 %s166, %s164
        %s168 = smul.addr %s167, 8
        %s169 = scalar_lea.vmem %s0, %s168
        %p170 = pneg %p58
        %p171 = pneg %p55
        %p172 = scmp.lt.s32.totalorder %s21, 1
        %s173 = scalar_select %p172, %s21, 1
        %p174 = scmp.lt.s32.totalorder %s23, 0
        %s175 = scalar_select %p174, %s23, 0
        %s176 = smul.addr %s173, 4
        %s177 = sadd.s32 %s175, %s176
        %s178 = smul.addr %s177, 8
        %s179 = scalar_lea.vmem %s1, %s178
        %p180 = pneg %p86
        %p181 = pneg %p83
        %p182 = pneg %p116
        %p183 = pneg %p113
        %s184 = sand.u32 %s103, 1
        %s185 = scalar_lea.sflag [#allocation3], %s184
        %s186 = sand.u32 %s103, 1
        %s187 = smul.addr %s186, 8
        %s188 = scalar_lea.vmem [#allocation2], %s187
        %p189 = scmp.lt.s32.totalorder %s21, 1
        %s190 = scalar_select %p189, %s21, 1
        %p191 = scmp.lt.s32.totalorder %s22, 0
        %s192 = scalar_select %p191, %s22, 0
        %s193 = sadd.s32 %s192, %s190
        %s194 = smul.addr %s193, 8
        %s195 = scalar_lea.vmem %s0, %s194
        %p196 = scmp.lt.s32.totalorder %s21, 1
        %s197 = scalar_select %p196, %s21, 1
        %p198 = scmp.lt.s32.totalorder %s23, 0
        %s199 = scalar_select %p198, %s23, 0
        %s200 = smul.addr %s197, 4
        %s201 = sadd.s32 %s199, %s200
        %s202 = smul.addr %s201, 8
        %s203 = scalar_lea.vmem %s1, %s202
        %v204 = vld [vmem:[%s195] sm:$0xff]
        %v205 = vld [vmem:[%s203] sm:$0xff]
        %v206 = vld [vmem:[%s203 + $0x8] sm:$0xff]
        %v207 = vld [vmem:[%s203 + $0x10] sm:$0xff]
        %v208 = vld [vmem:[%s203 + $0x18] sm:$0xff]
        %vm209 = vcmask 261120
        %v211 = vsel %vm209, %v204, 0
        %213 = vmatpush.msra.mxu0 0.0
        %214 = vmatpush.msra.mxu0 0.0
        %215 = vmatpush.msra.mxu0 0.0
        %216 = vmatpush.msra.mxu0 0.0
        %217 = vmatpush.msra.mxu0 0.0
        %218 = vmatpush.msra.mxu0 0.0
        %219 = vmatpush.msra.mxu0 0.0
        %220 = vmatpush.msra.mxu0 0.0
        %221 = vmatpush.msra.mxu0 0.0
        %222 = vmatpush.msra.mxu0 0.0
        %223 = vmatpush.msra.mxu0 0.0
        %224 = vmatpush.msra.mxu0 0.0
        %225 = vmatpush.msra.mxu0 %v208
        %226 = vmatpush.msra.mxu0 %v207
        %227 = vmatpush.msra.mxu0 %v206
        %228 = vmatpush.msra.mxu0 %v205
        %229 = vmatmul.f32.gmra.mxu0 %v211
        %v230 = vpop.f32.mrf.mxu0
        %v231 = vadd.f32 0.0, %v230
        %232 = vdwg.mxu0
        %vm233 = vcmask 130048
        %234 = vst.msk [vmem:[%s188] sm:$0xff] %vm233, %v231
        %s235 = sand.u32 %s103, 1
        %s236 = scalar_lea.sflag [#allocation3], %s235
        %s237 = sand.u32 %s103, 1
        %s238 = smul.addr %s237, 8
        %s239 = scalar_lea.vmem [#allocation2], %s238
        // Predicated region
        $region29: #{tpu_custom_call.1} parent=27 // pred_check
          %p240 = pneg %p113
        $region30: #{tpu_custom_call.1} parent=27 // pred_check_branch
          %242 = sbr.rel (%p240) target = $region32
        $region31: #{tpu_custom_call.1} parent=27 // pred_region
          %244 = vsyncadd %s236, 0
          %s245 = sadd.s32 %s23, %s22
          %s246 = sadd.s32 %s245, %s21
          %s247 = smul.addr %s246, 8
          %s248 = scalar_lea.hbm %s2, %s247
          %s250 = sshll.u32 %s239, 4
          %s251 = int_to_ptr.vmem [resolvable:$true] %s250
          %s252 = sshll.u32 %s248, 4
          %s253 = int_to_ptr.hbm [resolvable:$true] %s252
          %255 = dma.vmem_to_hbm [thread:$0]  %s251, 128, %s253, %s236
        $region32: #{tpu_custom_call.1} parent=27 // pred_fallthru
          _
      $region28: #{tpu_custom_call.1} parent=5 // pred_fallthru
        _
      %p256 = scmp.le.s32.totalorder 2, %s11
      // Predicated region
      $region33: #{tpu_custom_call.1} parent=5 // pred_check
        %p257 = pneg %p256
      $region34: #{tpu_custom_call.1} parent=5 // pred_check_branch
        %259 = sbr.rel (%p257) target = $region36
      $region35: #{tpu_custom_call.1} parent=5 // pred_region
        %s260 = ssub.s32 %s11, 2
        // Predicated region
        $region37: #{tpu_custom_call.1} parent=35 // pred_check
          %p261 = pneg %p119
        $region38: #{tpu_custom_call.1} parent=35 // pred_check_branch
          %263 = sbr.rel (%p261) target = $region40
        $region39: #{tpu_custom_call.1} parent=35 // pred_region
          %s264 = sand.u32 %s104, 1
          %s265 = scalar_lea.sflag [#allocation3], %s264
          %s266 = sand.u32 %s104, 1
          %s267 = smul.addr %s266, 8
          %s268 = scalar_lea.vmem [#allocation2], %s267
          %270 = dma.done %s265, 128
        $region40: #{tpu_custom_call.1} parent=35 // pred_fallthru
          _
      $region36: #{tpu_custom_call.1} parent=5 // pred_fallthru
        _
    $region6: #{tpu_custom_call.1} parent=1 // loop_footer
      %s15 = sadd.s32 1, %s11
    $region7: #{tpu_custom_call.1} parent=1 // loop_footer_branch
      %10 = sbr.rel target = $region3
    $region8: #{tpu_custom_call.1} parent=1 // loop_exit
      _
    %271 = vsyncpa [#allocation3], 1
    %s272 = scalar_lea.sflag [#allocation3], 1
    %273 = vsyncpa %s272, 1

</llo_original>
